<compile_context>
chip_gen: v7x
topology: tpu7x:2x2x1
jax: 0.10.0
libtpu: 0.0.40
codegen_flags: <defaults>
</compile_context>

<pallas_src>
import math

import jax
import jax.numpy as jnp
from jax.experimental import pallas as pl
from jax.experimental.pallas import tpu as pltpu

_LANE = 128
_SUBLANE = 8


def make_positional_encoding(d_model: int, max_len: int = 500,
                             dtype=jnp.float32) -> jnp.ndarray:
    """Deterministic sinusoidal table, identical to the PyTorch __init__."""
    assert d_model % 2 == 0, "sinusoidal PE requires even d_model"
    position = jnp.arange(0, max_len, dtype=jnp.float32)[:, None]            # (max_len, 1)
    div_term = jnp.exp(
        jnp.arange(0, d_model, 2, dtype=jnp.float32) * (-math.log(10000.0) / d_model)
    )                                                                         # (d_model//2,)
    pe = jnp.zeros((max_len, d_model), dtype=jnp.float32)
    pe = pe.at[:, 0::2].set(jnp.sin(position * div_term))
    pe = pe.at[:, 1::2].set(jnp.cos(position * div_term))
    return pe.astype(dtype)  # (max_len, d_model); leading unsqueeze(0) via broadcast


def prepare_pe(pe_full: jnp.ndarray, seq_len: int, dtype) -> jnp.ndarray:
    """Hoisted out of the hot path: slice to T, cast to x.dtype, flatten to (1, T*D)."""
    max_len, d_model = pe_full.shape
    assert seq_len <= max_len, f"sequence length {seq_len} exceeds max_len {max_len}"
    return pe_full[:seq_len, :].astype(dtype).reshape(1, seq_len * d_model)


def _pe_add_kernel(x_ref, pe_ref, o_ref):
    # x_ref / o_ref: (BB, TT) lane-dense tile.  pe_ref: (1, TT) chunk, broadcast
    # over sublanes; its block only changes on the outer (lane) grid axis.
    o_ref[...] = x_ref[...] + pe_ref[...]


def _plan_tiles(B: int, TD: int, itemsize: int, *,
                target_tile_bytes: int = 2 << 20,
                vmem_budget_bytes: int = 40 << 20):
    """Pick (BB, TT) block shape respecting (8, 128) rules and the VMEM budget."""
    # ---- lane (flattened T*D) axis ------------------------------------------
    if TD % _LANE == 0 and TD > _LANE:
        # ~target_tile_bytes per (8-row x TT) tile -> TT*itemsize ~ target/8.
        lane_elems = max(_LANE,
                         (target_tile_bytes // (_SUBLANE * itemsize)) // _LANE * _LANE)
        TT = min(TD, lane_elems)
        # Prefer a divisor of TD (both are multiples of 128): every lane block
        # is full -> unmasked vst, no padded DMA bytes.
        while TD % TT != 0:
            TT -= _LANE
    else:
        # Block last dim must be a multiple of 128 or equal the full dim.
        TT = TD

    # ---- sublane (batch) axis -------------------------------------------------
    chunk_bytes = TT * itemsize
    rows = max(1, target_tile_bytes // max(1, chunk_bytes))
    if rows >= B or B <= _SUBLANE:
        BB = B                                   # full batch (block == full dim is legal)
    else:
        BB = max(_SUBLANE, (rows // _SUBLANE) * _SUBLANE)
        BB = min(BB, (B // _SUBLANE) * _SUBLANE)

    # Guarantee >= 2 batch blocks when B is large enough (keeps both v7x
    # TensorCores busy even if the lane axis collapses to one block).
    if B >= 2 * _SUBLANE and BB >= B:
        BB = max(_SUBLANE, ((B // 2) // _SUBLANE) * _SUBLANE)

    # ---- clamp total resident VMEM against the per-generation budget ---------
    # 2 in-buffers + 2 out-buffers of (BB, TT) plus 2 pe buffers of (1, TT).
    def resident(bb):
        return (4 * bb + 2) * chunk_bytes

    while resident(BB) > vmem_budget_bytes and BB > _SUBLANE:
        BB = max(_SUBLANE, ((BB // 2) // _SUBLANE) * _SUBLANE)

    return BB, TT, resident(BB)


def positional_encoding_forward(x: jnp.ndarray, pe2: jnp.ndarray,
                                *, donate_x: bool = False) -> jnp.ndarray:
    """x: (B, T, D); pe2: (1, T*D) prepared via prepare_pe. Returns x + pe[:T]."""
    B, T, D = x.shape
    TD = T * D
    assert pe2.shape == (1, TD), f"pe2 shape {pe2.shape} != (1, {TD})"
    assert pe2.dtype == x.dtype, "prepare pe2 in x.dtype (prepare_pe does this)"

    itemsize = jnp.dtype(x.dtype).itemsize
    BB, TT, resident_bytes = _plan_tiles(B, TD, itemsize)

    # Lane-dense 2-D view (free reshape: row-major layout unchanged).
    x2 = x.reshape(B, TD)

    # Lane-chunk axis outer, batch axis inner: pe chunk stays resident across
    # the inner loop. Both axes are elementwise-independent -> "parallel".
    grid = (pl.cdiv(TD, TT), pl.cdiv(B, BB))

    vmem_limit = int(max(32 << 20, min(resident_bytes + (8 << 20), 64 << 20)))

    cost = pl.CostEstimate(
        flops=B * TD,
        transcendentals=0,
        bytes_accessed=(2 * B + 1) * TD * itemsize,
    )

    out2 = pl.pallas_call(
        _pe_add_kernel,
        out_shape=jax.ShapeDtypeStruct((B, TD), x.dtype),
        grid_spec=pl.GridSpec(
            grid=grid,
            in_specs=[
                pl.BlockSpec((BB, TT), lambda j, b: (b, j)),   # x: batch x lane-chunk tile
                pl.BlockSpec((1, TT), lambda j, b: (0, j)),    # pe: resident per lane-chunk
            ],
            out_specs=pl.BlockSpec((BB, TT), lambda j, b: (b, j)),
        ),
        compiler_params=pltpu.CompilerParams(
            dimension_semantics=("parallel", "parallel"),
            vmem_limit_bytes=vmem_limit,
        ),
        cost_estimate=cost,
        input_output_aliases=({0: 0} if donate_x else {}),
    )(x2, pe2)

    return out2.reshape(B, T, D)


def positional_encoding_apply(x: jnp.ndarray, pe_full: jnp.ndarray) -> jnp.ndarray:
    """Convenience wrapper matching the PyTorch forward(x) signature."""
    pe2 = prepare_pe(pe_full, x.shape[1], x.dtype)
    return positional_encoding_forward(x, pe2)


if __name__ == "__main__":
    d_model = 32
    max_len = 500
    B, T = 2, 8

    key = jax.random.PRNGKey(0)
    x = jax.random.normal(key, (B, T, d_model), dtype=jnp.float32)

    pe_table = make_positional_encoding(d_model, max_len, dtype=jnp.float32)
    pe2 = prepare_pe(pe_table, T, x.dtype)   # hoisted out of the per-call path

    out = positional_encoding_forward(x, pe2)
    out = jax.block_until_ready(out)

    # Reference check against plain JAX.
    ref = x + pe_table[None, :T, :].astype(x.dtype)
    assert out.shape == (B, T, d_model)
    assert jnp.allclose(out, ref, atol=1e-6), "mismatch vs reference"

    print("KERNEL_OK")
</pallas_src>

<mosaic_0001>
module attributes {stable_mosaic.version = 11 : i64} {
  func.func @_pe_add_kernel(%arg0: i32, %arg1: i32, %arg2: memref<2x256xf32, #tpu.memory_space<vmem>>, %arg3: memref<1x256xf32, #tpu.memory_space<vmem>>, %arg4: memref<2x256xf32, #tpu.memory_space<vmem>>) attributes {dimension_semantics = [#tpu.dimension_semantics<parallel>, #tpu.dimension_semantics<parallel>], iteration_bounds = array<i64: 1, 1>, scalar_prefetch = 0 : i64, scratch_operands = 0 : i64, tpu.core_type = #tpu.core_type<tc>, window_params = [{transform_indices = @transform_0, window_bounds = array<i64: 2, 256>}, {transform_indices = @transform_1, window_bounds = array<i64: 1, 256>}, {transform_indices = @transform_2, window_bounds = array<i64: 2, 256>}]} {
    %c0 = arith.constant 0 : index
    %c0_0 = arith.constant 0 : index
    %0 = vector.load %arg2[%c0, %c0_0] : memref<2x256xf32, #tpu.memory_space<vmem>>, vector<2x256xf32>
    %c0_1 = arith.constant 0 : index
    %c0_2 = arith.constant 0 : index
    %1 = vector.load %arg3[%c0_1, %c0_2] : memref<1x256xf32, #tpu.memory_space<vmem>>, vector<1x256xf32>
    %2 = vector.broadcast %1 : vector<1x256xf32> to vector<2x256xf32>
    %3 = arith.addf %0, %2 : vector<2x256xf32>
    %c0_3 = arith.constant 0 : index
    %c0_4 = arith.constant 0 : index
    %4 = vector.load %arg4[%c0_3, %c0_4] : memref<2x256xf32, #tpu.memory_space<vmem>>, vector<2x256xf32>
    tpu.vector_store %arg4[%c0_3, %c0_4], %3 {strides = array<i32>} : memref<2x256xf32, #tpu.memory_space<vmem>>, vector<2x256xf32>,
    return
  }
  func.func @transform_0(%arg0: i32, %arg1: i32) -> (i32, i32) {
    %c0_i32 = arith.constant 0 : i32
    return %arg1, %arg0 : i32, i32
  }
  func.func @transform_1(%arg0: i32, %arg1: i32) -> (i32, i32) {
    %c0_i32 = arith.constant 0 : i32
    %c0_i32_0 = arith.constant 0 : i32
    return %c0_i32, %arg0 : i32, i32
  }
  func.func @transform_2(%arg0: i32, %arg1: i32) -> (i32, i32) {
    %c0_i32 = arith.constant 0 : i32
    return %arg1, %arg0 : i32, i32
  }
}

</mosaic_0001>

<llo_original>
// kernel: tpu_custom_call.1
$region0: #{tpu_custom_call.1}
  #allocation0 [shape = 'u32[]', space=smem, size = 0x4, offset = 0x4, fixed_abs, tag = 'smem constant byte address 0x4 - core index']
  #allocation1 [shape = 'u32[144,128]{1,0:T(1,128)}', space=vmem, size = 0x12000, scoped, tag = 'internal scratch']
  %s0 = inlined_call_operand.hbm [shape: f32[2,256], index: 0, kind: input, shape index: {}]
  %s1 = inlined_call_operand.vmem [shape: f32[1,256], index: 1, kind: input, shape index: {}]
  %s2 = inlined_call_operand.hbm [shape: f32[2,256], index: 2, kind: output, shape index: {}]
  %s3 = sld [smem:[#allocation0]]
  $region22: #{tpu_custom_call.1} parent=0
    _
  %s5 = ssub.s32 1, %s3
  %s6 = scalar_select 0, %s5, %s3
  $region1: #{tpu_custom_call.1} parent=0
    #allocation2 [shape = 'u8[2048]{0}', space=vmem, size = 0x800, scoped, tag = 'input window, operand 0, single buffered']
    #allocation3 [shape = 's32[1]{0}', space=sflag, size = 0x4, scoped, tag = 'scoped memory for tpu_custom_call.1']
    #allocation4 [shape = 's32[1]{0}', space=sflag, size = 0x4, scoped, tag = 'scoped memory for tpu_custom_call.1']
    #allocation5 [shape = 'u8[2048]{0}', space=vmem, size = 0x800, scoped, tag = 'output window, operand 0, single buffered']
    %7 = vsyncpa [#allocation3], 0
    %8 = vsyncpa [#allocation4], 0
    // Predicated region
    $region2: #{tpu_custom_call.1} parent=1 // pred_check
      _
    $region3: #{tpu_custom_call.1} parent=1 // pred_check_branch
      %10 = sbr.rel (0) target = $region5
    $region4: #{tpu_custom_call.1} parent=1 // pred_region
      %s12 = ssub.s32 64, 64
      %13 = vsyncadd [#allocation3], %s12
      %s15 = sshll.u32 [#allocation2], 4
      %s16 = int_to_ptr.vmem [resolvable:$true] %s15
      %18 = dma.hbm_to_vmem [thread:$0]  %s0, 64, %s16, [#allocation3]
    $region5: #{tpu_custom_call.1} parent=1 // pred_fallthru
      _
    // Predicated region
    $region6: #{tpu_custom_call.1} parent=1 // pred_check
      _
    $region7: #{tpu_custom_call.1} parent=1 // pred_check_branch
      %20 = sbr.rel (0) target = $region9
    $region8: #{tpu_custom_call.1} parent=1 // pred_region
      _
    $region9: #{tpu_custom_call.1} parent=1 // pred_fallthru
      _
    // Predicated region
    $region10: #{tpu_custom_call.1} parent=1 // pred_check
      _
    $region11: #{tpu_custom_call.1} parent=1 // pred_check_branch
      %22 = sbr.rel (0) target = $region13
    $region12: #{tpu_custom_call.1} parent=1 // pred_region
      %23 = dma.done [#allocation3], 64
    $region13: #{tpu_custom_call.1} parent=1 // pred_fallthru
      _
    %v24 = vld [vmem:[#allocation2] sm:$0xf]
    %v25 = vld [vmem:[%s1] sm:$0x3]
    %v27 = vlaneseq
    %v28 = vshrl.u32 %v27, 7
    %v29 = vsub.s32 0, %v28
    %v30 = vrot.slane %v25, %v29
    %v31 = vlaneseq
    %v32 = vshrl.u32 %v31, 7
    %v33 = vsub.s32 1, %v32
    %v34 = vrot.slane %v25, %v33
    %v35 = vcombine.low %v30, %v34
    %v37 = vunpack.c.l.s4 1983009808
    %v38 = vunpack.c.0.s8 %v37
    %v39 = vlaneseq
    %v40 = vshrl.u32 %v39, 7
    %v41 = vsub.s32 %v38, %v40
    %v42 = vrot.slane %v35, %v41
    %v44 = vadd.f32 %v24, %v42
    %45 = vst [vmem:[#allocation5] sm:$0xf] %v44
    // Predicated region
    $region14: #{tpu_custom_call.1} parent=1 // pred_check
      _
    $region15: #{tpu_custom_call.1} parent=1 // pred_check_branch
      %47 = sbr.rel (0) target = $region17
    $region16: #{tpu_custom_call.1} parent=1 // pred_region
      %s49 = ssub.s32 64, 64
      %50 = vsyncadd [#allocation4], %s49
      %s52 = sshll.u32 [#allocation5], 4
      %s53 = int_to_ptr.vmem [resolvable:$true] %s52
      %55 = dma.vmem_to_hbm [thread:$0]  %s53, 64, %s2, [#allocation4]
    $region17: #{tpu_custom_call.1} parent=1 // pred_fallthru
      _
    // Predicated region
    $region18: #{tpu_custom_call.1} parent=1 // pred_check
      _
    $region19: #{tpu_custom_call.1} parent=1 // pred_check_branch
      %57 = sbr.rel (0) target = $region21
    $region20: #{tpu_custom_call.1} parent=1 // pred_region
      %58 = dma.done [#allocation4], 64
    $region21: #{tpu_custom_call.1} parent=1 // pred_fallthru
      _
    %59 = vsyncpa [#allocation3], 1
    %60 = vsyncpa [#allocation4], 1

</llo_original>
